<compile_context>
chip_gen: v7x
topology: tpu7x:2x2x1
jax: 0.10.0
libtpu: 0.0.40
codegen_flags: <defaults>
</compile_context>

<pallas_src>
import functools
import math

import jax
import jax.numpy as jnp
from jax.experimental import pallas as pl
from jax.experimental.pallas import tpu as pltpu


# ---------------------------------------------------------------------------
# Shared per-feature finalize, traced inside the kernels ("wide" layout).
# ---------------------------------------------------------------------------
def _finalize_wide(s_w, ss_w, lg_w, beta_w, rm_w, rv_w, *,
                   n_rows, fold, feat, momentum, eps):
    """All tensors are (1, W = fold*feat) f32 with the feature axis tiled `fold`
    times along lanes.  s_w/ss_w hold per-lane partial sum / sum-of-squares; the
    fold lane-blocks are all-reduced with XLU lane rotations (pltpu.roll), so the
    per-feature result is replicated across lane-blocks and every downstream op
    stays full-lane-width (no unaligned lane slicing, no masked stores)."""
    s_tot, ss_tot = s_w, ss_w
    for j in range(1, fold):                       # fold is a static Python int
        s_tot = s_tot + pltpu.roll(s_w, shift=j * feat, axis=1)
        ss_tot = ss_tot + pltpu.roll(ss_w, shift=j * feat, axis=1)
    inv_n = 1.0 / n_rows
    inv_nm1 = 1.0 / max(n_rows - 1, 1)             # N==1: var->0 (torch gives NaN)
    mean = s_tot * inv_n
    # Unbiased variance (torch.Tensor.var default, ddof=1), f32 accumulation.
    var = jnp.maximum((ss_tot - mean * mean * float(n_rows)) * inv_nm1, 0.0)
    inv_std = jax.lax.rsqrt(var + eps)
    scale = jnp.exp(lg_w) * inv_std
    shift = beta_w - mean * scale
    ladj = lg_w - 0.5 * jnp.log(var + eps)
    new_rm = rm_w * momentum + mean * (1.0 - momentum)
    new_rv = rv_w * momentum + var * (1.0 - momentum)
    return scale, shift, ladj, new_rm, new_rv


# ---------------------------------------------------------------------------
# Kernel 1: fully fused training forward (x resident in VMEM, read once).
# ---------------------------------------------------------------------------
def _bn_fused_train_kernel(x_ref, lg_ref, beta_ref, rm_ref, rv_ref,
                           y_ref, ladj_ref, nrm_ref, nrv_ref,
                           *, n_rows, fold, feat, momentum, eps):
    x = x_ref[...].astype(jnp.float32)                       # (M, W)
    s_w = jnp.sum(x, axis=0, keepdims=True)                   # (1, W)
    ss_w = jnp.sum(x * x, axis=0, keepdims=True)               # (1, W)
    scale, shift, ladj, nrm, nrv = _finalize_wide(
        s_w, ss_w,
        lg_ref[...].astype(jnp.float32), beta_ref[...].astype(jnp.float32),
        rm_ref[...].astype(jnp.float32), rv_ref[...].astype(jnp.float32),
        n_rows=n_rows, fold=fold, feat=feat, momentum=momentum, eps=eps)
    ladj_ref[...] = ladj
    nrm_ref[...] = nrm
    nrv_ref[...] = nrv
    y_ref[...] = (x * scale + shift).astype(y_ref.dtype)


# ---------------------------------------------------------------------------
# Kernel 2: tiled stats reduction + fused per-feature finalize (training).
# scale_ref/shift_ref double as the f32 sum / sum-of-squares accumulators.
# ---------------------------------------------------------------------------
def _bn_stats_kernel(x_ref, lg_ref, beta_ref, rm_ref, rv_ref,
                     scale_ref, shift_ref, ladj_ref, nrm_ref, nrv_ref,
                     *, n_rows, folded_rows, tile_rows, fold, feat,
                     momentum, eps, needs_mask):
    i = pl.program_id(0)

    @pl.when(i == 0)
    def _init():
        scale_ref[...] = jnp.zeros_like(scale_ref)   # running sum(x)
        shift_ref[...] = jnp.zeros_like(shift_ref)   # running sum(x*x)

    x = x_ref[...].astype(jnp.float32)               # (tile_rows, W)
    if needs_mask:  # static: only emitted when the last tile is ragged
        row = jax.lax.broadcasted_iota(jnp.int32, x.shape, 0) + i * tile_rows
        x = jnp.where(row < folded_rows, x, 0.0)
    scale_ref[...] += jnp.sum(x, axis=0, keepdims=True)
    shift_ref[...] += jnp.sum(x * x, axis=0, keepdims=True)

    @pl.when(i == pl.num_programs(0) - 1)
    def _finalize():
        scale, shift, ladj, nrm, nrv = _finalize_wide(
            scale_ref[...], shift_ref[...],
            lg_ref[...].astype(jnp.float32), beta_ref[...].astype(jnp.float32),
            rm_ref[...].astype(jnp.float32), rv_ref[...].astype(jnp.float32),
            n_rows=n_rows, fold=fold, feat=feat, momentum=momentum, eps=eps)
        scale_ref[...] = scale
        shift_ref[...] = shift
        ladj_ref[...] = ladj
        nrm_ref[...] = nrm
        nrv_ref[...] = nrv


# ---------------------------------------------------------------------------
# Kernel 3: fused normalize + affine, purely elementwise: y = x*scale + shift.
# ---------------------------------------------------------------------------
def _bn_affine_kernel(x_ref, scale_ref, shift_ref, y_ref):
    x = x_ref[...].astype(jnp.float32)
    y_ref[...] = (x * scale_ref[...] + shift_ref[...]).astype(y_ref.dtype)


# ---------------------------------------------------------------------------
# Generation-aware VMEM / tiling helpers
# ---------------------------------------------------------------------------
def _vmem_limit_bytes():
    """~70% of physical VMEM (128 MiB on v5e/v6e, 64 MiB on v7x); explicit so the
    v5e 16 MiB / v6e 32 MiB scoped defaults never constrain the tiles."""
    cap = 64 << 20   # conservative fallback (v7x-sized)
    try:
        cap = int(getattr(pltpu.get_tpu_info(), "vmem_capacity_bytes", cap))
    except Exception:
        pass
    return max(32 << 20, int(cap * 0.7))


def _pick_row_tile(n_rows, width, dtype, budget_bytes):
    """Largest row tile whose single buffer fits `budget_bytes`; no artificial
    clamp, rounded to the dtype's sublane multiple (8 f32 / 16 bf16 / 32 int8)."""
    itemsize = jnp.dtype(dtype).itemsize
    sub = max(8, 32 // max(itemsize, 1))
    max_rows = max(sub, budget_bytes // max(width * itemsize, 1))
    if n_rows <= max_rows:
        return n_rows                        # single block: block == full dim
    return max(sub, (max_rows // sub) * sub)


def _fold_factor(n_rows, d):
    """Fold k rows into lanes so the last dim becomes a multiple of 128."""
    if d >= 128 or d % 128 == 0:
        return 1
    k = math.lcm(d, 128) // d
    if k > 1 and n_rows % k == 0:
        return k
    return 1


def _tile_wide(v, fold):
    """(D,) param -> (1, fold*D) f32, matching the lane-folded x layout."""
    v = v.reshape(1, -1).astype(jnp.float32)
    if fold > 1:
        v = jnp.tile(v, (1, fold))
    return v


# ---------------------------------------------------------------------------
# pallas_call wrappers
# ---------------------------------------------------------------------------
def _fused_train_call(xf, lg_w, beta_w, rm_w, rv_w, *,
                      n_rows, fold, feat, momentum, eps, vmem_limit):
    M, W = xf.shape
    kernel = functools.partial(
        _bn_fused_train_kernel, n_rows=n_rows, fold=fold, feat=feat,
        momentum=momentum, eps=eps)
    return pl.pallas_call(
        kernel,
        out_shape=(jax.ShapeDtypeStruct((M, W), xf.dtype),     # y
                   jax.ShapeDtypeStruct((1, W), jnp.float32),  # ladj (wide)
                   jax.ShapeDtypeStruct((1, W), jnp.float32),  # new running mean
                   jax.ShapeDtypeStruct((1, W), jnp.float32)), # new running var
        compiler_params=pltpu.CompilerParams(vmem_limit_bytes=vmem_limit),
    )(xf, lg_w, beta_w, rm_w, rv_w)


def _stats_train_call(xf, lg_w, beta_w, rm_w, rv_w, *,
                      n_rows, fold, feat, momentum, eps, vmem_limit):
    M, W = xf.shape
    # Input tile is double-buffered + f32 intermediates; keep ~1/6 of the limit.
    tile_m = _pick_row_tile(M, W, xf.dtype, max(vmem_limit // 6, 1 << 20))
    grid = (pl.cdiv(M, tile_m),)
    needs_mask = (M % tile_m) != 0
    kernel = functools.partial(
        _bn_stats_kernel, n_rows=n_rows, folded_rows=M, tile_rows=tile_m,
        fold=fold, feat=feat, momentum=momentum, eps=eps, needs_mask=needs_mask)
    param_spec = pl.BlockSpec((1, W), lambda i: (0, 0))
    wide_out = pl.BlockSpec((1, W), lambda i: (0, 0))
    return pl.pallas_call(
        kernel,
        out_shape=(jax.ShapeDtypeStruct((1, W), jnp.float32),   # scale (acc: sum)
                   jax.ShapeDtypeStruct((1, W), jnp.float32),   # shift (acc: sumsq)
                   jax.ShapeDtypeStruct((1, W), jnp.float32),   # ladj
                   jax.ShapeDtypeStruct((1, W), jnp.float32),   # new running mean
                   jax.ShapeDtypeStruct((1, W), jnp.float32)),  # new running var
        grid=grid,
        in_specs=[pl.BlockSpec((tile_m, W), lambda i: (i, 0)),
                  param_spec, param_spec, param_spec, param_spec],
        out_specs=(wide_out, wide_out, wide_out, wide_out, wide_out),
        compiler_params=pltpu.CompilerParams(
            dimension_semantics=("arbitrary",),        # reduction axis
            vmem_limit_bytes=vmem_limit),
    )(xf, lg_w, beta_w, rm_w, rv_w)


def _apply_affine(xf, scale_w, shift_w, *, vmem_limit):
    M, W = xf.shape
    # in + out tiles double-buffered (4 buffers) + headroom -> 1/6 of the limit.
    tile_m = _pick_row_tile(M, W, xf.dtype, max(vmem_limit // 6, 1 << 20))
    grid = (pl.cdiv(M, tile_m),)
    return pl.pallas_call(
        _bn_affine_kernel,
        out_shape=jax.ShapeDtypeStruct((M, W), xf.dtype),
        grid=grid,
        in_specs=[pl.BlockSpec((tile_m, W), lambda i: (i, 0)),
                  pl.BlockSpec((1, W), lambda i: (0, 0)),
                  pl.BlockSpec((1, W), lambda i: (0, 0))],
        out_specs=pl.BlockSpec((tile_m, W), lambda i: (i, 0)),
        compiler_params=pltpu.CompilerParams(
            dimension_semantics=("parallel",),         # megacore-shardable
            vmem_limit_bytes=vmem_limit),
    )(xf, scale_w, shift_w)


# ---------------------------------------------------------------------------
# Public forward (matches BatchNorm.forward semantics)
# ---------------------------------------------------------------------------
def batchnorm_forward(x, log_gamma, beta, running_mean, running_var,
                      *, training=True, momentum=0.9, eps=1e-5,
                      _force_two_pass=False):
    """Returns (y, log_abs_det_jacobian, new_running_mean, new_running_var).

      y    = exp(log_gamma) * (x - mean) / sqrt(var + eps) + beta
      ladj = (log_gamma - 0.5*log(var + eps)) expanded to x.shape
    """
    orig_shape = x.shape
    D = orig_shape[-1]
    x2 = x.reshape(-1, D)
    N = x2.shape[0]

    k = _fold_factor(N, D)                   # lane-dense layout when D < 128
    M, W = N // k, k * D
    xf = x2.reshape(M, W)
    itemsize = jnp.dtype(x.dtype).itemsize
    limit = _vmem_limit_bytes()

    if training:
        # NOTE: unbiased variance needs N >= 2 rows (torch gives NaN at N==1;
        # here N==1 yields var=0 — documented deviation).
        lg_w = _tile_wide(log_gamma, k)
        beta_w = _tile_wide(beta, k)
        rm_w = _tile_wide(running_mean, k)
        rv_w = _tile_wide(running_var, k)

        # Fused single-kernel path when x (+ f32 intermediates + y) fits in VMEM.
        fused_bytes = 2 * M * W * itemsize + 2 * M * W * 4 + (1 << 20)
        if fused_bytes <= limit and not _force_two_pass:
            yf, ladj_w, nrm_w, nrv_w = _fused_train_call(
                xf, lg_w, beta_w, rm_w, rv_w, n_rows=N, fold=k, feat=D,
                momentum=momentum, eps=eps, vmem_limit=limit)
        else:
            scale_w, shift_w, ladj_w, nrm_w, nrv_w = _stats_train_call(
                xf, lg_w, beta_w, rm_w, rv_w, n_rows=N, fold=k, feat=D,
                momentum=momentum, eps=eps, vmem_limit=limit)
            yf = _apply_affine(xf, scale_w, shift_w, vmem_limit=limit)

        ladj_feat = ladj_w[0, :D]
        new_running_mean = nrm_w[0, :D].astype(running_mean.dtype)
        new_running_var = nrv_w[0, :D].astype(running_var.dtype)
    else:
        # Eval mode: per-feature math on (D,) is a handful of trivial XLA ops.
        mean = running_mean.astype(jnp.float32)
        var = running_var.astype(jnp.float32)
        inv_std = jax.lax.rsqrt(var + eps)
        scale = jnp.exp(log_gamma.astype(jnp.float32)) * inv_std
        shift = beta.astype(jnp.float32) - mean * scale
        ladj_feat = log_gamma.astype(jnp.float32) - 0.5 * jnp.log(var + eps)
        yf = _apply_affine(xf, _tile_wide(scale, k), _tile_wide(shift, k),
                           vmem_limit=limit)
        new_running_mean = running_mean
        new_running_var = running_var

    y = yf.reshape(orig_shape)
    # ladj is purely per-feature: broadcast lazily (no (N, D) HBM writeback).
    ladj = jnp.broadcast_to(ladj_feat, orig_shape)
    return y, ladj, new_running_mean, new_running_var


# ---------------------------------------------------------------------------
# Demo / correctness check
# ---------------------------------------------------------------------------
if __name__ == "__main__":
    key = jax.random.PRNGKey(0)
    B, S, D = 2, 8, 32                 # batch=2, seq=8, input_size=32
    x = jax.random.normal(key, (B, S, D), dtype=jnp.float32)

    # Parameter / buffer init matching the module's __init__:
    log_gamma = jnp.zeros((D,), jnp.float32)
    beta = jnp.zeros((D,), jnp.float32)
    running_mean = jnp.zeros((D,), jnp.float32)
    running_var = jnp.ones((D,), jnp.float32)

    # Training-mode forward: fused single-kernel path
    y, ladj, rm, rv = batchnorm_forward(
        x, log_gamma, beta, running_mean, running_var,
        training=True, momentum=0.9, eps=1e-5)
    jax.block_until_ready((y, ladj, rm, rv))

    # Training-mode forward: exercise the tiled stats+affine path too
    y2, ladj2, rm2, rv2 = batchnorm_forward(
        x, log_gamma, beta, running_mean, running_var,
        training=True, momentum=0.9, eps=1e-5, _force_two_pass=True)
    jax.block_until_ready((y2, ladj2, rm2, rv2))

    # Eval-mode forward (running stats, elementwise kernel only)
    y_e, ladj_e, _, _ = batchnorm_forward(
        x, log_gamma, beta, rm, rv,
        training=False, momentum=0.9, eps=1e-5)
    jax.block_until_ready((y_e, ladj_e))

    # Pure-JAX reference (training mode)
    x2 = x.reshape(-1, D)
    mean_ref = x2.mean(0)
    var_ref = x2.var(0, ddof=1)
    y_ref = jnp.exp(log_gamma) * (x - mean_ref) / jnp.sqrt(var_ref + 1e-5) + beta
    ladj_ref = jnp.broadcast_to(log_gamma - 0.5 * jnp.log(var_ref + 1e-5), x.shape)
    assert jnp.allclose(y, y_ref, atol=1e-5, rtol=1e-5)
    assert jnp.allclose(ladj, ladj_ref, atol=1e-5, rtol=1e-5)
    assert jnp.allclose(rm, 0.9 * running_mean + 0.1 * mean_ref, atol=1e-5)
    assert jnp.allclose(rv, 0.9 * running_var + 0.1 * var_ref, atol=1e-5)
    assert jnp.allclose(y2, y_ref, atol=1e-5, rtol=1e-5)
    assert jnp.allclose(ladj2, ladj_ref, atol=1e-5, rtol=1e-5)
    assert jnp.allclose(rm2, rm, atol=1e-6)
    assert jnp.allclose(rv2, rv, atol=1e-6)

    # Pure-JAX reference (eval mode, running stats rm/rv)
    y_e_ref = jnp.exp(log_gamma) * (x - rm) / jnp.sqrt(rv + 1e-5) + beta
    ladj_e_ref = jnp.broadcast_to(log_gamma - 0.5 * jnp.log(rv + 1e-5), x.shape)
    assert jnp.allclose(y_e, y_e_ref, atol=1e-5, rtol=1e-5)
    assert jnp.allclose(ladj_e, ladj_e_ref, atol=1e-5, rtol=1e-5)

    print("KERNEL_OK")
</pallas_src>

<mosaic_0001>
module attributes {stable_mosaic.version = 11 : i64} {
  func.func @_bn_fused_train_kernel(%arg0: memref<4x128xf32, #tpu.memory_space<vmem>>, %arg1: memref<1x128xf32, #tpu.memory_space<vmem>>, %arg2: memref<1x128xf32, #tpu.memory_space<vmem>>, %arg3: memref<1x128xf32, #tpu.memory_space<vmem>>, %arg4: memref<1x128xf32, #tpu.memory_space<vmem>>, %arg5: memref<4x128xf32, #tpu.memory_space<vmem>>, %arg6: memref<1x128xf32, #tpu.memory_space<vmem>>, %arg7: memref<1x128xf32, #tpu.memory_space<vmem>>, %arg8: memref<1x128xf32, #tpu.memory_space<vmem>>) attributes {dimension_semantics = [], scalar_prefetch = 0 : i64, scratch_operands = 0 : i64, tpu.core_type = #tpu.core_type<tc>} {
    %c0 = arith.constant 0 : index
    %c0_0 = arith.constant 0 : index
    %0 = vector.load %arg0[%c0, %c0_0] : memref<4x128xf32, #tpu.memory_space<vmem>>, vector<4x128xf32>
    %cst = arith.constant dense<0.000000e+00> : vector<128xf32>
    %1 = vector.multi_reduction <add>, %0, %cst [0] : vector<4x128xf32> to vector<128xf32>
    %2 = vector.shape_cast %1 : vector<128xf32> to vector<1x128xf32>
    %3 = arith.mulf %0, %0 : vector<4x128xf32>
    %cst_1 = arith.constant dense<0.000000e+00> : vector<128xf32>
    %4 = vector.multi_reduction <add>, %3, %cst_1 [0] : vector<4x128xf32> to vector<128xf32>
    %5 = vector.shape_cast %4 : vector<128xf32> to vector<1x128xf32>
    %c0_2 = arith.constant 0 : index
    %c0_3 = arith.constant 0 : index
    %6 = vector.load %arg1[%c0_2, %c0_3] : memref<1x128xf32, #tpu.memory_space<vmem>>, vector<1x128xf32>
    %c0_4 = arith.constant 0 : index
    %c0_5 = arith.constant 0 : index
    %7 = vector.load %arg2[%c0_4, %c0_5] : memref<1x128xf32, #tpu.memory_space<vmem>>, vector<1x128xf32>
    %c0_6 = arith.constant 0 : index
    %c0_7 = arith.constant 0 : index
    %8 = vector.load %arg3[%c0_6, %c0_7] : memref<1x128xf32, #tpu.memory_space<vmem>>, vector<1x128xf32>
    %c0_8 = arith.constant 0 : index
    %c0_9 = arith.constant 0 : index
    %9 = vector.load %arg4[%c0_8, %c0_9] : memref<1x128xf32, #tpu.memory_space<vmem>>, vector<1x128xf32>
    %c32_i32 = arith.constant 32 : i32
    %10 = tpu.dynamic_rotate %2 by %c32_i32 dim 1 : vector<1x128xf32>, i32 -> vector<1x128xf32>
    %11 = arith.addf %2, %10 : vector<1x128xf32>
    %c32_i32_10 = arith.constant 32 : i32
    %12 = tpu.dynamic_rotate %5 by %c32_i32_10 dim 1 : vector<1x128xf32>, i32 -> vector<1x128xf32>
    %13 = arith.addf %5, %12 : vector<1x128xf32>
    %c64_i32 = arith.constant 64 : i32
    %14 = tpu.dynamic_rotate %2 by %c64_i32 dim 1 : vector<1x128xf32>, i32 -> vector<1x128xf32>
    %15 = arith.addf %11, %14 : vector<1x128xf32>
    %c64_i32_11 = arith.constant 64 : i32
    %16 = tpu.dynamic_rotate %5 by %c64_i32_11 dim 1 : vector<1x128xf32>, i32 -> vector<1x128xf32>
    %17 = arith.addf %13, %16 : vector<1x128xf32>
    %c96_i32 = arith.constant 96 : i32
    %18 = tpu.dynamic_rotate %2 by %c96_i32 dim 1 : vector<1x128xf32>, i32 -> vector<1x128xf32>
    %19 = arith.addf %15, %18 : vector<1x128xf32>
    %c96_i32_12 = arith.constant 96 : i32
    %20 = tpu.dynamic_rotate %5 by %c96_i32_12 dim 1 : vector<1x128xf32>, i32 -> vector<1x128xf32>
    %21 = arith.addf %17, %20 : vector<1x128xf32>
    %cst_13 = arith.constant 6.250000e-02 : f32
    %22 = vector.broadcast %cst_13 : f32 to vector<1x128xf32>
    %23 = arith.mulf %19, %22 : vector<1x128xf32>
    %24 = arith.mulf %23, %23 : vector<1x128xf32>
    %cst_14 = arith.constant 1.600000e+01 : f32
    %25 = vector.broadcast %cst_14 : f32 to vector<1x128xf32>
    %26 = arith.mulf %24, %25 : vector<1x128xf32>
    %27 = arith.subf %21, %26 : vector<1x128xf32>
    %cst_15 = arith.constant 0.0666666701 : f32
    %28 = vector.broadcast %cst_15 : f32 to vector<1x128xf32>
    %29 = arith.mulf %27, %28 : vector<1x128xf32>
    %cst_16 = arith.constant 0.000000e+00 : f32
    %30 = vector.broadcast %cst_16 : f32 to vector<1x128xf32>
    %31 = arith.maximumf %29, %30 : vector<1x128xf32>
    %cst_17 = arith.constant 9.99999974E-6 : f32
    %32 = vector.broadcast %cst_17 : f32 to vector<1x128xf32>
    %33 = arith.addf %31, %32 : vector<1x128xf32>
    %34 = math.rsqrt %33 : vector<1x128xf32>
    %35 = math.exp %6 : vector<1x128xf32>
    %36 = arith.mulf %35, %34 : vector<1x128xf32>
    %37 = arith.mulf %23, %36 : vector<1x128xf32>
    %38 = arith.subf %7, %37 : vector<1x128xf32>
    %cst_18 = arith.constant 9.99999974E-6 : f32
    %39 = vector.broadcast %cst_18 : f32 to vector<1x128xf32>
    %40 = arith.addf %31, %39 : vector<1x128xf32>
    %41 = math.log %40 : vector<1x128xf32>
    %cst_19 = arith.constant 5.000000e-01 : f32
    %42 = vector.broadcast %cst_19 : f32 to vector<1x128xf32>
    %43 = arith.mulf %42, %41 : vector<1x128xf32>
    %44 = arith.subf %6, %43 : vector<1x128xf32>
    %cst_20 = arith.constant 0.899999976 : f32
    %45 = vector.broadcast %cst_20 : f32 to vector<1x128xf32>
    %46 = arith.mulf %8, %45 : vector<1x128xf32>
    %cst_21 = arith.constant 1.000000e-01 : f32
    %47 = vector.broadcast %cst_21 : f32 to vector<1x128xf32>
    %48 = arith.mulf %23, %47 : vector<1x128xf32>
    %49 = arith.addf %46, %48 : vector<1x128xf32>
    %cst_22 = arith.constant 0.899999976 : f32
    %50 = vector.broadcast %cst_22 : f32 to vector<1x128xf32>
    %51 = arith.mulf %9, %50 : vector<1x128xf32>
    %cst_23 = arith.constant 1.000000e-01 : f32
    %52 = vector.broadcast %cst_23 : f32 to vector<1x128xf32>
    %53 = arith.mulf %31, %52 : vector<1x128xf32>
    %54 = arith.addf %51, %53 : vector<1x128xf32>
    %c0_24 = arith.constant 0 : index
    %c0_25 = arith.constant 0 : index
    %55 = vector.load %arg6[%c0_24, %c0_25] : memref<1x128xf32, #tpu.memory_space<vmem>>, vector<1x128xf32>
    tpu.vector_store %arg6[%c0_24, %c0_25], %44 {strides = array<i32>} : memref<1x128xf32, #tpu.memory_space<vmem>>, vector<1x128xf32>,
    %c0_26 = arith.constant 0 : index
    %c0_27 = arith.constant 0 : index
    %56 = vector.load %arg7[%c0_26, %c0_27] : memref<1x128xf32, #tpu.memory_space<vmem>>, vector<1x128xf32>
    tpu.vector_store %arg7[%c0_26, %c0_27], %49 {strides = array<i32>} : memref<1x128xf32, #tpu.memory_space<vmem>>, vector<1x128xf32>,
    %c0_28 = arith.constant 0 : index
    %c0_29 = arith.constant 0 : index
    %57 = vector.load %arg8[%c0_28, %c0_29] : memref<1x128xf32, #tpu.memory_space<vmem>>, vector<1x128xf32>
    tpu.vector_store %arg8[%c0_28, %c0_29], %54 {strides = array<i32>} : memref<1x128xf32, #tpu.memory_space<vmem>>, vector<1x128xf32>,
    %58 = vector.broadcast %36 : vector<1x128xf32> to vector<4x128xf32>
    %59 = arith.mulf %0, %58 : vector<4x128xf32>
    %60 = vector.broadcast %38 : vector<1x128xf32> to vector<4x128xf32>
    %61 = arith.addf %59, %60 : vector<4x128xf32>
    %c0_30 = arith.constant 0 : index
    %c0_31 = arith.constant 0 : index
    %62 = vector.load %arg5[%c0_30, %c0_31] : memref<4x128xf32, #tpu.memory_space<vmem>>, vector<4x128xf32>
    tpu.vector_store %arg5[%c0_30, %c0_31], %61 {strides = array<i32>} : memref<4x128xf32, #tpu.memory_space<vmem>>, vector<4x128xf32>,
    return
  }
}

</mosaic_0001>

<llo_original>
// kernel: tpu_custom_call.1
$region0: #{tpu_custom_call.1}
  #allocation0 [shape = 'u32[]', space=smem, size = 0x4, offset = 0x4, fixed_abs, tag = 'smem constant byte address 0x4 - core index']
  #allocation1 [shape = 'u32[144,128]{1,0:T(1,128)}', space=vmem, size = 0x12000, scoped, tag = 'internal scratch']
  %s0 = inlined_call_operand.hbm [shape: f32[4,128], index: 0, kind: input, shape index: {}]
  %s1 = inlined_call_operand.vmem [shape: f32[1,128], index: 1, kind: input, shape index: {}]
  %s2 = inlined_call_operand.vmem [shape: f32[1,128], index: 2, kind: input, shape index: {}]
  %s3 = inlined_call_operand.vmem [shape: f32[1,128], index: 3, kind: input, shape index: {}]
  %s4 = inlined_call_operand.vmem [shape: f32[1,128], index: 4, kind: input, shape index: {}]
  %s5 = inlined_call_operand.hbm [shape: f32[4,128], index: 5, kind: output, shape index: {0}]
  %s6 = inlined_call_operand.hbm [shape: f32[1,128], index: 6, kind: output, shape index: {1}]
  %s7 = inlined_call_operand.hbm [shape: f32[1,128], index: 7, kind: output, shape index: {2}]
  %s8 = inlined_call_operand.hbm [shape: f32[1,128], index: 8, kind: output, shape index: {3}]
  %9 = xla_tuple %s5, %s6, %s7, %s8
  %s10 = sld [smem:[#allocation0]]
  $region58: #{tpu_custom_call.1} parent=0
    _
  %s12 = ssub.s32 1, %s10
  %s13 = scalar_select 0, %s12, %s10
  $region1: #{tpu_custom_call.1} parent=0
    #allocation2 [shape = 'u8[2048]{0}', space=vmem, size = 0x800, scoped, tag = 'input window, operand 0, single buffered']
    #allocation3 [shape = 's32[1]{0}', space=sflag, size = 0x4, scoped, tag = 'scoped memory for tpu_custom_call.1']
    #allocation4 [shape = 's32[1]{0}', space=sflag, size = 0x4, scoped, tag = 'scoped memory for tpu_custom_call.1']
    #allocation5 [shape = 'u8[2048]{0}', space=vmem, size = 0x800, scoped, tag = 'output window, operand 0, single buffered']
    #allocation6 [shape = 'u8[512]{0}', space=vmem, size = 0x400, scoped, tag = 'output window, operand 1, single buffered']
    #allocation7 [shape = 's32[1]{0}', space=sflag, size = 0x4, scoped, tag = 'scoped memory for tpu_custom_call.1']
    #allocation8 [shape = 'u8[512]{0}', space=vmem, size = 0x400, scoped, tag = 'output window, operand 2, single buffered']
    #allocation9 [shape = 'u8[512]{0}', space=vmem, size = 0x400, scoped, tag = 'output window, operand 3, single buffered']
    #allocation10 [shape = 's32[1]{0}', space=sflag, size = 0x4, scoped, tag = 'scoped memory for tpu_custom_call.1']
    %14 = vsyncpa [#allocation3], 0
    %15 = vsyncpa [#allocation4], 0
    %16 = vsyncpa [#allocation7], 0
    %17 = vsyncpa [#allocation10], 0
    // Predicated region
    $region2: #{tpu_custom_call.1} parent=1 // pred_check
      _
    $region3: #{tpu_custom_call.1} parent=1 // pred_check_branch
      %19 = sbr.rel (0) target = $region5
    $region4: #{tpu_custom_call.1} parent=1 // pred_region
      %s21 = ssub.s32 64, 64
      %22 = vsyncadd [#allocation3], %s21
      %s24 = sshll.u32 [#allocation2], 4
      %s25 = int_to_ptr.vmem [resolvable:$true] %s24
      %27 = dma.hbm_to_vmem [thread:$0]  %s0, 64, %s25, [#allocation3]
    $region5: #{tpu_custom_call.1} parent=1 // pred_fallthru
      _
    // Predicated region
    $region6: #{tpu_custom_call.1} parent=1 // pred_check
      _
    $region7: #{tpu_custom_call.1} parent=1 // pred_check_branch
      %29 = sbr.rel (0) target = $region9
    $region8: #{tpu_custom_call.1} parent=1 // pred_region
      _
    $region9: #{tpu_custom_call.1} parent=1 // pred_fallthru
      _
    // Predicated region
    $region10: #{tpu_custom_call.1} parent=1 // pred_check
      _
    $region11: #{tpu_custom_call.1} parent=1 // pred_check_branch
      %31 = sbr.rel (0) target = $region13
    $region12: #{tpu_custom_call.1} parent=1 // pred_region
      _
    $region13: #{tpu_custom_call.1} parent=1 // pred_fallthru
      _
    // Predicated region
    $region14: #{tpu_custom_call.1} parent=1 // pred_check
      _
    $region15: #{tpu_custom_call.1} parent=1 // pred_check_branch
      %33 = sbr.rel (0) target = $region17
    $region16: #{tpu_custom_call.1} parent=1 // pred_region
      _
    $region17: #{tpu_custom_call.1} parent=1 // pred_fallthru
      _
    // Predicated region
    $region18: #{tpu_custom_call.1} parent=1 // pred_check
      _
    $region19: #{tpu_custom_call.1} parent=1 // pred_check_branch
      %35 = sbr.rel (0) target = $region21
    $region20: #{tpu_custom_call.1} parent=1 // pred_region
      _
    $region21: #{tpu_custom_call.1} parent=1 // pred_fallthru
      _
    // Predicated region
    $region22: #{tpu_custom_call.1} parent=1 // pred_check
      _
    $region23: #{tpu_custom_call.1} parent=1 // pred_check_branch
      %37 = sbr.rel (0) target = $region25
    $region24: #{tpu_custom_call.1} parent=1 // pred_region
      %38 = dma.done [#allocation3], 64
    $region25: #{tpu_custom_call.1} parent=1 // pred_fallthru
      _
    %v39 = vld [vmem:[#allocation2] sm:$0xf]
    %vm40 = vcmask 1043456
    %v41 = vsel %vm40, %v39, 0.0
    %v42 = vrot.slane %v41, 4
    %v43 = vadd.f32 %v41, %v42
    %v44 = vrot.slane %v43, 2
    %v45 = vadd.f32 %v43, %v44
    %v46 = vrot.slane %v45, 1
    %v47 = vadd.f32 %v45, %v46
    %v48 = vmul.f32 %v39, %v39
    %v49 = vsel %vm40, %v48, 0.0
    %v50 = vrot.slane %v49, 4
    %v51 = vadd.f32 %v49, %v50
    %v52 = vrot.slane %v51, 2
    %v53 = vadd.f32 %v51, %v52
    %v54 = vrot.slane %v53, 1
    %v55 = vadd.f32 %v53, %v54
    %v56 = vld [vmem:[%s1] sm:$0x1]
    %v57 = vld [vmem:[%s2] sm:$0x1]
    %v58 = vld [vmem:[%s3] sm:$0x1]
    %v59 = vld [vmem:[%s4] sm:$0x1]
    %60 = vrot.lane.b32.xlu0 %v47, 32
    %v61 = vpop.permute.xlu0 %60
    %v62 = vadd.f32 %v47, %v61
    %63 = vrot.lane.b32.xlu0 %v55, 32
    %v64 = vpop.permute.xlu0 %63
    %v65 = vadd.f32 %v55, %v64
    %66 = vrot.lane.b32.xlu0 %v47, 64
    %v67 = vpop.permute.xlu0 %66
    %v68 = vadd.f32 %v62, %v67
    %69 = vrot.lane.b32.xlu0 %v55, 64
    %v70 = vpop.permute.xlu0 %69
    %v71 = vadd.f32 %v65, %v70
    %72 = vrot.lane.b32.xlu0 %v47, 96
    %v73 = vpop.permute.xlu0 %72
    %v74 = vadd.f32 %v68, %v73
    %75 = vrot.lane.b32.xlu0 %v55, 96
    %v76 = vpop.permute.xlu0 %75
    %v77 = vadd.f32 %v71, %v76
    %v78 = vmul.f32 %v74, 0.0625
    %v79 = vmul.f32 %v78, %v78
    %v80 = vmul.f32 %v79, 16.0
    %v81 = vsub.f32 %v77, %v80
    %v82 = vmul.f32 %v81, 0.06666667
    %v83 = vmax.f32 %v82, 0.0
    %v84 = vadd.f32 %v83, 1e-05
    %v85 = vrsqrt.pop %v84
    %v86 = vmul.f32 %v56, 1.442695
    %v87 = vpow.pop %v86
    %v88 = vmul.f32 %v87, %v85
    %v89 = vmul.f32 %v78, %v88
    %v90 = vsub.f32 %v57, %v89
    %v91 = vlog2.pop %v84
    %v92 = vmul.f32 %v91, 0.6931472
    %v93 = vmul.f32 %v92, 0.5
    %v94 = vsub.f32 %v56, %v93
    %v95 = vmul.f32 %v58, 0.9
    %v96 = vmul.f32 %v78, 0.1
    %v97 = vadd.f32 %v95, %v96
    %v98 = vmul.f32 %v59, 0.9
    %v99 = vmul.f32 %v83, 0.1
    %v100 = vadd.f32 %v98, %v99
    %101 = vst [vmem:[#allocation6] sm:$0x1] %v94
    %102 = vst [vmem:[#allocation8] sm:$0x1] %v97
    %103 = vst [vmem:[#allocation9] sm:$0x1] %v100
    %v105 = vlaneseq
    %v106 = vshrl.u32 %v105, 7
    %v107 = vsub.s32 0, %v106
    %v108 = vrot.slane %v88, %v107
    %v110 = vmul.f32 %v39, %v108
    %v112 = vlaneseq
    %v113 = vshrl.u32 %v112, 7
    %v114 = vsub.s32 0, %v113
    %v115 = vrot.slane %v90, %v114
    %v117 = vadd.f32 %v110, %v115
    %118 = vst [vmem:[#allocation5] sm:$0xf] %v117
    // Predicated region
    $region26: #{tpu_custom_call.1} parent=1 // pred_check
      _
    $region27: #{tpu_custom_call.1} parent=1 // pred_check_branch
      %120 = sbr.rel (0) target = $region29
    $region28: #{tpu_custom_call.1} parent=1 // pred_region
      %s122 = ssub.s32 64, 64
      %123 = vsyncadd [#allocation4], %s122
      %s125 = sshll.u32 [#allocation5], 4
      %s126 = int_to_ptr.vmem [resolvable:$true] %s125
      %128 = dma.vmem_to_hbm [thread:$0]  %s126, 64, %s5, [#allocation4]
    $region29: #{tpu_custom_call.1} parent=1 // pred_fallthru
      _
    // Predicated region
    $region30: #{tpu_custom_call.1} parent=1 // pred_check
      _
    $region31: #{tpu_custom_call.1} parent=1 // pred_check_branch
      %130 = sbr.rel (0) target = $region33
    $region32: #{tpu_custom_call.1} parent=1 // pred_region
      %s132 = ssub.s32 16, 16
      %133 = vsyncadd [#allocation7], %s132
      %s135 = sshll.u32 [#allocation6], 4
      %s136 = int_to_ptr.vmem [resolvable:$true] %s135
      %138 = dma.vmem_to_hbm [thread:$0]  %s136, 16, %s6, [#allocation7]
    $region33: #{tpu_custom_call.1} parent=1 // pred_fallthru
      _
    // Predicated region
    $region34: #{tpu_custom_call.1} parent=1 // pred_check
      _
    $region35: #{tpu_custom_call.1} parent=1 // pred_check_branch
      %140 = sbr.rel (0) target = $region37
    $region36: #{tpu_custom_call.1} parent=1 // pred_region
      %s142 = ssub.s32 16, 16
      %143 = vsyncadd [#allocation7], %s142
      %s145 = sshll.u32 [#allocation8], 4
      %s146 = int_to_ptr.vmem [resolvable:$true] %s145
      %148 = dma.vmem_to_hbm [thread:$0]  %s146, 16, %s7, [#allocation7]
    $region37: #{tpu_custom_call.1} parent=1 // pred_fallthru
      _
    // Predicated region
    $region38: #{tpu_custom_call.1} parent=1 // pred_check
      _
    $region39: #{tpu_custom_call.1} parent=1 // pred_check_branch
      %150 = sbr.rel (0) target = $region41
    $region40: #{tpu_custom_call.1} parent=1 // pred_region
      %s152 = ssub.s32 16, 16
      %153 = vsyncadd [#allocation10], %s152
      %s155 = sshll.u32 [#allocation9], 4
      %s156 = int_to_ptr.vmem [resolvable:$true] %s155
      %158 = dma.vmem_to_hbm [thread:$0]  %s156, 16, %s8, [#allocation10]
    $region41: #{tpu_custom_call.1} parent=1 // pred_fallthru
      _
    // Predicated region
    $region42: #{tpu_custom_call.1} parent=1 // pred_check
      _
    $region43: #{tpu_custom_call.1} parent=1 // pred_check_branch
      %160 = sbr.rel (0) target = $region45
    $region44: #{tpu_custom_call.1} parent=1 // pred_region
      %161 = dma.done [#allocation4], 64
    $region45: #{tpu_custom_call.1} parent=1 // pred_fallthru
      _
    // Predicated region
    $region46: #{tpu_custom_call.1} parent=1 // pred_check
      _
    $region47: #{tpu_custom_call.1} parent=1 // pred_check_branch
      %163 = sbr.rel (0) target = $region49
    $region48: #{tpu_custom_call.1} parent=1 // pred_region
      %164 = dma.done [#allocation7], 16
    $region49: #{tpu_custom_call.1} parent=1 // pred_fallthru
      _
    // Predicated region
    $region50: #{tpu_custom_call.1} parent=1 // pred_check
      _
    $region51: #{tpu_custom_call.1} parent=1 // pred_check_branch
      %166 = sbr.rel (0) target = $region53
    $region52: #{tpu_custom_call.1} parent=1 // pred_region
      %167 = dma.done [#allocation7], 16
    $region53: #{tpu_custom_call.1} parent=1 // pred_fallthru
      _
    // Predicated region
    $region54: #{tpu_custom_call.1} parent=1 // pred_check
      _
    $region55: #{tpu_custom_call.1} parent=1 // pred_check_branch
      %169 = sbr.rel (0) target = $region57
    $region56: #{tpu_custom_call.1} parent=1 // pred_region
      %170 = dma.done [#allocation10], 16
    $region57: #{tpu_custom_call.1} parent=1 // pred_fallthru
      _
    %171 = vsyncpa [#allocation3], 1
    %172 = vsyncpa [#allocation4], 1
    %173 = vsyncpa [#allocation7], 1
    %174 = vsyncpa [#allocation10], 1

</llo_original>
